<compile_context>
chip_gen: v7x
topology: tpu7x:2x2x1
jax: 0.10.0
libtpu: 0.0.40
codegen_flags: <defaults>
</compile_context>

<pallas_src>
import functools
import math

import jax
import jax.numpy as jnp
from jax.experimental import pallas as pl
from jax.experimental.pallas import tpu as pltpu


def _round_up(v, m):
    return (v + m - 1) // m * m


# ---------------------------------------------------------------------------
# Kernel: one (tm, E_pad) output row tile; grid axis 1 walks the hidden
# (n_state) reduction in tk-wide slices.  f32 accumulation in a VMEM scratch,
# init at k==0, bias-add + writeback at k==last (pattern P3).
# ---------------------------------------------------------------------------
def mlp_kernel(x_ref, wfc_ref, bfc_ref, wproj_ref, bproj_ref, o_ref, acc_ref):
    # x_ref:     (tm, E_pad)             wfc_ref:   (E_pad, tk)
    # bfc_ref:   (1, tk)    f32          wproj_ref: (tk, E_pad)
    # bproj_ref: (1, E_pad) f32          o_ref:     (tm, E_pad)
    # acc_ref:   (tm, E_pad) f32 scratch (persists across the k axis)
    k = pl.program_id(1)

    @pl.when(k == 0)
    def _():
        acc_ref[...] = jnp.zeros_like(acc_ref)

    # First matmul for this hidden-dim slice; bias + ReLU in f32.
    h = jnp.dot(x_ref[...], wfc_ref[...], preferred_element_type=jnp.float32)
    h = jnp.maximum(h + bfc_ref[...], 0.0)

    # Second matmul: accumulate this slice's contribution in f32.
    acc_ref[...] += jnp.dot(h.astype(wproj_ref.dtype), wproj_ref[...],
                            preferred_element_type=jnp.float32)

    @pl.when(k == pl.num_programs(1) - 1)
    def _():
        # TODO(synk): eval-mode dropout = identity; no mask applied.
        o_ref[...] = (acc_ref[...] + bproj_ref[...]).astype(o_ref.dtype)


# ---------------------------------------------------------------------------
# Device / tiling policy
# ---------------------------------------------------------------------------
@functools.lru_cache(maxsize=1)
def _device_info():
    """Returns (is_v7x, per-core VMEM capacity bytes)."""
    try:
        kind = (jax.devices()[0].device_kind or "").lower()
    except Exception:
        kind = ""
    is_v7 = "v7" in kind
    vmem_cap = None
    try:
        vmem_cap = int(pltpu.get_tpu_info().vmem_capacity_bytes)
    except Exception:
        vmem_cap = None
    if not vmem_cap or vmem_cap <= 0:
        vmem_cap = (64 << 20) if is_v7 else (128 << 20)
    if is_v7:
        vmem_cap = min(vmem_cap, 64 << 20)   # 64 MiB per TensorCore on v7x
    return is_v7, vmem_cap


def _vmem_bytes(tm, tk, E_pad, cb, ob, w_bufs):
    """Accurate per-step VMEM footprint (no double-counted buffering)."""
    return (2 * tm * E_pad * cb                 # x tile (double-buffered)
            + w_bufs * E_pad * tk * cb          # w_fc slice (w_bufs-deep)
            + w_bufs * 8 * tk * 4               # b_fc slice (sublane-padded f32)
            + w_bufs * tk * E_pad * cb          # w_proj slice (w_bufs-deep)
            + 2 * 8 * E_pad * 4                 # b_proj (f32)
            + 2 * tm * E_pad * ob               # out tile (double-buffered)
            + tm * E_pad * 4)                   # f32 accumulator scratch


# ---------------------------------------------------------------------------
# Parameter preparation (hoist pad + cast out of the per-call hot path)
# ---------------------------------------------------------------------------
def prepare_mlp_params(w_fc, b_fc, w_proj, b_proj, compute_dtype=jnp.bfloat16):
    """Pad weights to 128-dense tiles and cast to the MXU compute dtype once."""
    E, H = w_fc.shape
    assert w_proj.shape == (H, E) and b_fc.shape == (H,) and b_proj.shape == (E,)
    E_pad = max(_round_up(E, 128), 128)
    H_pad = max(_round_up(H, 128), 128)
    compute_dtype = jnp.dtype(compute_dtype)
    return dict(
        w_fc=jnp.pad(w_fc, ((0, E_pad - E), (0, H_pad - H))).astype(compute_dtype),
        w_proj=jnp.pad(w_proj, ((0, H_pad - H), (0, E_pad - E))).astype(compute_dtype),
        b_fc=jnp.pad(b_fc, (0, H_pad - H)).reshape(1, H_pad).astype(jnp.float32),
        b_proj=jnp.pad(b_proj, (0, E_pad - E)).reshape(1, E_pad).astype(jnp.float32),
        n_embd=E, n_state=H, E_pad=E_pad, H_pad=H_pad, compute_dtype=compute_dtype)


# ---------------------------------------------------------------------------
# Forward
# ---------------------------------------------------------------------------
def mlp_forward_prepared(x, params, *, tm=None, tk=None):
    """x: (..., n_embd) -> (..., n_embd), using pre-padded/pre-cast params."""
    E = params["n_embd"]
    E_pad, H_pad = params["E_pad"], params["H_pad"]
    compute_dtype = params["compute_dtype"]
    assert x.shape[-1] == E

    M = math.prod(x.shape[:-1])
    out_dtype = x.dtype
    cb = compute_dtype.itemsize
    ob = jnp.dtype(out_dtype).itemsize

    is_v7, vmem_cap = _device_info()
    vmem_budget = max(vmem_cap - (16 << 20), 24 << 20)   # gen-aware headroom

    # ---- reduction tile over n_state (prefer 256-multiples: v6e/v7x MXU) ----
    if tk is None:
        tk = 128
        for cand in (512, 256, 384, 128):
            if cand <= H_pad and H_pad % cand == 0:
                tk = cand
                break
    assert H_pad % tk == 0 and tk % 128 == 0
    n_k = H_pad // tk
    # Deeper buffering on the streamed weight slices when the reduction is
    # long enough to benefit (hides k-step DMA bubbles when mem-bound).
    w_bufs = 3 if n_k >= 3 else 2

    # ---- row tile: biggest MXU-aligned tm that fits VMEM and does not pad M
    #      by more than ~12% (raises arithmetic intensity 2*tm/cb above the
    #      v6e/v7x weight-streaming ridge when M is large) ----
    auto_tm = tm is None
    if auto_tm:
        waste_cap = max(M // 8, 127)
        tm = 128
        for cand in (1024, 512, 256):
            if (_round_up(M, cand) - M) <= waste_cap and \
               _vmem_bytes(cand, tk, E_pad, cb, ob, w_bufs) <= vmem_budget:
                tm = cand
                break
    M_pad = _round_up(M, tm)
    if is_v7 and auto_tm:
        # v7x has 2 TensorCores: keep >= 2 row tiles on the "parallel" axis.
        while M_pad // tm < 2 and tm > 128:
            tm //= 2
            M_pad = _round_up(M, tm)
    assert M_pad % tm == 0 and tm % 128 == 0

    # ---- pad activations (numerically exact; sliced off below) ----
    x2d = jnp.pad(x.reshape(M, E),
                  ((0, M_pad - M), (0, E_pad - E))).astype(compute_dtype)

    def _wspec(shape, index_map):
        if w_bufs == 2:
            return pl.BlockSpec(shape, index_map)
        return pl.BlockSpec(shape, index_map, pipeline_mode=pl.Buffered(w_bufs))

    grid = (M_pad // tm, n_k)

    out2d = pl.pallas_call(
        mlp_kernel,
        out_shape=jax.ShapeDtypeStruct((M_pad, E_pad), out_dtype),
        grid_spec=pltpu.PrefetchScalarGridSpec(
            num_scalar_prefetch=0,
            grid=grid,
            in_specs=[
                pl.BlockSpec((tm, E_pad), lambda i, k: (i, 0)),    # x row tile
                _wspec((E_pad, tk), lambda i, k: (0, k)),          # w_fc slice
                pl.BlockSpec((1, tk), lambda i, k: (0, k)),        # b_fc slice
                _wspec((tk, E_pad), lambda i, k: (k, 0)),          # w_proj slice
                pl.BlockSpec((1, E_pad), lambda i, k: (0, 0)),     # b_proj
            ],
            out_specs=pl.BlockSpec((tm, E_pad), lambda i, k: (i, 0)),
            scratch_shapes=[pltpu.VMEM((tm, E_pad), jnp.float32)],
        ),
        compiler_params=pltpu.CompilerParams(
            dimension_semantics=("parallel", "arbitrary"),
            vmem_limit_bytes=int(vmem_budget),
        ),
    )(x2d, params["w_fc"], params["b_fc"], params["w_proj"], params["b_proj"])

    return out2d[:M, :E].reshape(x.shape)


def mlp_forward(x, w_fc, b_fc, w_proj, b_proj, *, tm=None, tk=None,
                compute_dtype=jnp.bfloat16):
    """Convenience wrapper (pads/casts weights per call).  For repeated calls,
    build params once with prepare_mlp_params and call mlp_forward_prepared."""
    params = prepare_mlp_params(w_fc, b_fc, w_proj, b_proj, compute_dtype)
    return mlp_forward_prepared(x, params, tm=tm, tk=tk)


def mlp_reference(x, w_fc, b_fc, w_proj, b_proj):
    h = jnp.maximum(jnp.einsum("bse,eh->bsh", x, w_fc) + b_fc, 0.0)
    return jnp.einsum("bsh,he->bse", h, w_proj) + b_proj


if __name__ == "__main__":
    key = jax.random.PRNGKey(0)
    keys = jax.random.split(key, 9)

    # ---- Test 1: module-scale shapes (batch=2, seq=8, n_embd=32, n_state=128)
    B, S, n_embd, n_state = 2, 8, 32, 128
    x = jax.random.normal(keys[0], (B, S, n_embd), dtype=jnp.float32)
    w_fc = 0.02 * jax.random.normal(keys[1], (n_embd, n_state), dtype=jnp.float32)
    b_fc = jnp.zeros((n_state,), dtype=jnp.float32)
    w_proj = 0.02 * jax.random.normal(keys[2], (n_state, n_embd), dtype=jnp.float32)
    b_proj = jnp.zeros((n_embd,), dtype=jnp.float32)

    ref = mlp_reference(x, w_fc, b_fc, w_proj, b_proj)

    out_f32 = jax.block_until_ready(
        mlp_forward(x, w_fc, b_fc, w_proj, b_proj, compute_dtype=jnp.float32))
    assert out_f32.shape == (B, S, n_embd)
    assert jnp.allclose(out_f32, ref, atol=1e-5, rtol=1e-5)

    out_bf16 = jax.block_until_ready(mlp_forward(x, w_fc, b_fc, w_proj, b_proj))
    assert jnp.allclose(out_bf16, ref, atol=1.5e-2, rtol=2e-2)

    # ---- Test 2: multi-tile grid in both axes + padding + Buffered(3) weights
    B2, S2, E2, H2 = 2, 160, 96, 1536     # M=320 -> 3 row tiles; 3 k-steps
    x2 = jax.random.normal(keys[3], (B2, S2, E2), dtype=jnp.float32)
    w_fc2 = 0.02 * jax.random.normal(keys[4], (E2, H2), dtype=jnp.float32)
    b_fc2 = jnp.zeros((H2,), dtype=jnp.float32)
    w_proj2 = 0.02 * jax.random.normal(keys[5], (H2, E2), dtype=jnp.float32)
    b_proj2 = jnp.zeros((E2,), dtype=jnp.float32)

    ref2 = mlp_reference(x2, w_fc2, b_fc2, w_proj2, b_proj2)

    out2_f32 = jax.block_until_ready(
        mlp_forward(x2, w_fc2, b_fc2, w_proj2, b_proj2, compute_dtype=jnp.float32))
    assert out2_f32.shape == (B2, S2, E2)
    assert jnp.allclose(out2_f32, ref2, atol=1e-4, rtol=1e-4)

    out2_bf16 = jax.block_until_ready(
        mlp_forward(x2, w_fc2, b_fc2, w_proj2, b_proj2))
    assert jnp.allclose(out2_bf16, ref2, atol=1.5e-2, rtol=2e-2)

    # ---- Test 3: large-M path (big row tile) + cached prepared params
    B3, S3, E3, H3 = 4, 256, 64, 256      # M=1024 -> tm auto-selects 1024 (512x2 on v7x)
    x3 = jax.random.normal(keys[6], (B3, S3, E3), dtype=jnp.float32)
    w_fc3 = 0.02 * jax.random.normal(keys[7], (E3, H3), dtype=jnp.float32)
    b_fc3 = jnp.zeros((H3,), dtype=jnp.float32)
    w_proj3 = 0.02 * jax.random.normal(keys[8], (H3, E3), dtype=jnp.float32)
    b_proj3 = jnp.zeros((E3,), dtype=jnp.float32)

    params3 = prepare_mlp_params(w_fc3, b_fc3, w_proj3, b_proj3)  # cached once
    out3 = jax.block_until_ready(mlp_forward_prepared(x3, params3))
    ref3 = mlp_reference(x3, w_fc3, b_fc3, w_proj3, b_proj3)
    assert out3.shape == (B3, S3, E3)
    assert jnp.allclose(out3, ref3, atol=1.5e-2, rtol=2e-2)

    print("KERNEL_OK")
</pallas_src>

<mosaic_0001>
module attributes {stable_mosaic.version = 11 : i64} {
  func.func @mlp_kernel(%arg0: i32, %arg1: i32, %arg2: memref<128x128xf32, #tpu.memory_space<vmem>>, %arg3: memref<128x128xf32, #tpu.memory_space<vmem>>, %arg4: memref<1x128xf32, #tpu.memory_space<vmem>>, %arg5: memref<128x128xf32, #tpu.memory_space<vmem>>, %arg6: memref<1x128xf32, #tpu.memory_space<vmem>>, %arg7: memref<128x128xf32, #tpu.memory_space<vmem>>, %arg8: memref<128x128xf32, #tpu.memory_space<vmem>>) attributes {dimension_semantics = [#tpu.dimension_semantics<parallel>, #tpu.dimension_semantics<arbitrary>], iteration_bounds = array<i64: 1, 1>, scalar_prefetch = 0 : i64, scratch_operands = 1 : i64, tpu.core_type = #tpu.core_type<tc>, window_params = [{transform_indices = @transform_0, window_bounds = array<i64: 128, 128>}, {transform_indices = @transform_1, window_bounds = array<i64: 128, 128>}, {transform_indices = @transform_2, window_bounds = array<i64: 1, 128>}, {transform_indices = @transform_3, window_bounds = array<i64: 128, 128>}, {pipeline_mode = #tpu.pipeline_mode<synchronous>, transform_indices = @transform_4, window_bounds = array<i64: 1, 128>}, {transform_indices = @transform_5, window_bounds = array<i64: 128, 128>}]} {
    %c0_i32 = arith.constant 0 : i32
    %0 = arith.cmpi eq, %arg1, %c0_i32 : i32
    %1 = arith.extui %0 : i1 to i32
    %c0_i32_0 = arith.constant 0 : i32
    %2 = arith.cmpi ne, %1, %c0_i32_0 : i32
    scf.if %2 {
      %cst_16 = arith.constant 0.000000e+00 : f32
      %19 = vector.broadcast %cst_16 : f32 to vector<128x128xf32>
      %c0_17 = arith.constant 0 : index
      %c0_18 = arith.constant 0 : index
      %20 = vector.load %arg8[%c0_17, %c0_18] : memref<128x128xf32, #tpu.memory_space<vmem>>, vector<128x128xf32>
      tpu.vector_store %arg8[%c0_17, %c0_18], %19 {strides = array<i32>} : memref<128x128xf32, #tpu.memory_space<vmem>>, vector<128x128xf32>,
    } else {
    }
    %c0 = arith.constant 0 : index
    %c0_1 = arith.constant 0 : index
    %3 = vector.load %arg2[%c0, %c0_1] : memref<128x128xf32, #tpu.memory_space<vmem>>, vector<128x128xf32>
    %c0_2 = arith.constant 0 : index
    %c0_3 = arith.constant 0 : index
    %4 = vector.load %arg3[%c0_2, %c0_3] : memref<128x128xf32, #tpu.memory_space<vmem>>, vector<128x128xf32>
    %cst = arith.constant dense<0.000000e+00> : vector<128x128xf32>
    %5 = tpu.matmul %3, %4, %cst {dimension_numbers = #tpu.dot_dimension_numbers<[1], [0], [0], [1], [0, 0, 1, 1], [], []>} : vector<128x128xf32>, vector<128x128xf32>, vector<128x128xf32> -> vector<128x128xf32>
    %c0_4 = arith.constant 0 : index
    %c0_5 = arith.constant 0 : index
    %6 = vector.load %arg4[%c0_4, %c0_5] : memref<1x128xf32, #tpu.memory_space<vmem>>, vector<1x128xf32>
    %7 = vector.broadcast %6 : vector<1x128xf32> to vector<128x128xf32>
    %8 = arith.addf %5, %7 : vector<128x128xf32>
    %cst_6 = arith.constant 0.000000e+00 : f32
    %9 = vector.broadcast %cst_6 : f32 to vector<128x128xf32>
    %10 = arith.maximumf %8, %9 : vector<128x128xf32>
    %c0_7 = arith.constant 0 : index
    %c0_8 = arith.constant 0 : index
    %11 = vector.load %arg8[%c0_7, %c0_8] : memref<128x128xf32, #tpu.memory_space<vmem>>, vector<128x128xf32>
    %c0_9 = arith.constant 0 : index
    %c0_10 = arith.constant 0 : index
    %12 = vector.load %arg5[%c0_9, %c0_10] : memref<128x128xf32, #tpu.memory_space<vmem>>, vector<128x128xf32>
    %cst_11 = arith.constant dense<0.000000e+00> : vector<128x128xf32>
    %13 = tpu.matmul %10, %12, %cst_11 {dimension_numbers = #tpu.dot_dimension_numbers<[1], [0], [0], [1], [0, 0, 1, 1], [], []>} : vector<128x128xf32>, vector<128x128xf32>, vector<128x128xf32> -> vector<128x128xf32>
    %14 = arith.addf %11, %13 : vector<128x128xf32>
    %c0_12 = arith.constant 0 : index
    %c0_13 = arith.constant 0 : index
    %15 = vector.load %arg8[%c0_12, %c0_13] : memref<128x128xf32, #tpu.memory_space<vmem>>, vector<128x128xf32>
    tpu.vector_store %arg8[%c0_12, %c0_13], %14 {strides = array<i32>} : memref<128x128xf32, #tpu.memory_space<vmem>>, vector<128x128xf32>,
    %c0_i32_14 = arith.constant 0 : i32
    %16 = arith.cmpi eq, %arg1, %c0_i32_14 : i32
    %17 = arith.extui %16 : i1 to i32
    %c0_i32_15 = arith.constant 0 : i32
    %18 = arith.cmpi ne, %17, %c0_i32_15 : i32
    scf.if %18 {
      %c0_16 = arith.constant 0 : index
      %c0_17 = arith.constant 0 : index
      %19 = vector.load %arg8[%c0_16, %c0_17] : memref<128x128xf32, #tpu.memory_space<vmem>>, vector<128x128xf32>
      %c0_18 = arith.constant 0 : index
      %c0_19 = arith.constant 0 : index
      %20 = vector.load %arg6[%c0_18, %c0_19] : memref<1x128xf32, #tpu.memory_space<vmem>>, vector<1x128xf32>
      %21 = vector.broadcast %20 : vector<1x128xf32> to vector<128x128xf32>
      %22 = arith.addf %19, %21 : vector<128x128xf32>
      %c0_20 = arith.constant 0 : index
      %c0_21 = arith.constant 0 : index
      %23 = vector.load %arg7[%c0_20, %c0_21] : memref<128x128xf32, #tpu.memory_space<vmem>>, vector<128x128xf32>
      tpu.vector_store %arg7[%c0_20, %c0_21], %22 {strides = array<i32>} : memref<128x128xf32, #tpu.memory_space<vmem>>, vector<128x128xf32>,
    } else {
    }
    return
  }
  func.func @transform_0(%arg0: i32, %arg1: i32) -> (i32, i32) {
    %c0_i32 = arith.constant 0 : i32
    %c0_i32_0 = arith.constant 0 : i32
    return %arg0, %c0_i32 : i32, i32
  }
  func.func @transform_1(%arg0: i32, %arg1: i32) -> (i32, i32) {
    %c0_i32 = arith.constant 0 : i32
    %c0_i32_0 = arith.constant 0 : i32
    return %c0_i32, %arg1 : i32, i32
  }
  func.func @transform_2(%arg0: i32, %arg1: i32) -> (i32, i32) {
    %c0_i32 = arith.constant 0 : i32
    %c0_i32_0 = arith.constant 0 : i32
    return %c0_i32, %arg1 : i32, i32
  }
  func.func @transform_3(%arg0: i32, %arg1: i32) -> (i32, i32) {
    %c0_i32 = arith.constant 0 : i32
    %c0_i32_0 = arith.constant 0 : i32
    return %arg1, %c0_i32 : i32, i32
  }
  func.func @transform_4(%arg0: i32, %arg1: i32) -> (i32, i32) {
    %c0_i32 = arith.constant 0 : i32
    %c0_i32_0 = arith.constant 0 : i32
    %c0_i32_1 = arith.constant 0 : i32
    return %c0_i32, %c0_i32_0 : i32, i32
  }
  func.func @transform_5(%arg0: i32, %arg1: i32) -> (i32, i32) {
    %c0_i32 = arith.constant 0 : i32
    %c0_i32_0 = arith.constant 0 : i32
    return %arg0, %c0_i32 : i32, i32
  }
}

</mosaic_0001>

<llo_original>
// kernel: tpu_custom_call.1
$region0: #{tpu_custom_call.1}
  #allocation0 [shape = 'u32[]', space=smem, size = 0x4, offset = 0x4, fixed_abs, tag = 'smem constant byte address 0x4 - core index']
  #allocation1 [shape = 'u32[144,128]{1,0:T(1,128)}', space=vmem, size = 0x12000, scoped, tag = 'internal scratch']
  #allocation2 [shape = 'f32[128,128]{1,0:T(8,128)}', space=vmem, size = 0x10000, scoped, tag = 'scratch operand']
  %s0 = inlined_call_operand.hbm [shape: f32[128,128], index: 0, kind: input, shape index: {}]
  %s1 = inlined_call_operand.hbm [shape: f32[128,128], index: 1, kind: input, shape index: {}]
  %s2 = inlined_call_operand.hbm [shape: f32[1,128], index: 2, kind: input, shape index: {}]
  %s3 = inlined_call_operand.hbm [shape: f32[128,128], index: 3, kind: input, shape index: {}]
  %s4 = inlined_call_operand.hbm [shape: f32[1,128], index: 4, kind: input, shape index: {}]
  %s5 = inlined_call_operand.hbm [shape: f32[128,128], index: 5, kind: output, shape index: {}]
  %s6 = sld [smem:[#allocation0]]
  $region58: #{tpu_custom_call.1} parent=0
    _
  %s8 = ssub.s32 1, %s6
  %s9 = scalar_select 0, %s8, %s6
  $region1: #{tpu_custom_call.1} parent=0
    #allocation3 [shape = 'u8[65536]{0}', space=vmem, size = 0x10000, scoped, tag = 'input window, operand 0, single buffered']
    #allocation4 [shape = 's32[1]{0}', space=sflag, size = 0x4, scoped, tag = 'scoped memory for tpu_custom_call.1']
    #allocation5 [shape = 's32[1]{0}', space=sflag, size = 0x4, scoped, tag = 'scoped memory for tpu_custom_call.1']
    #allocation6 [shape = 'u8[65536]{0}', space=vmem, size = 0x10000, scoped, tag = 'input window, operand 1, single buffered']
    #allocation7 [shape = 's32[1]{0}', space=sflag, size = 0x4, scoped, tag = 'scoped memory for tpu_custom_call.1']
    #allocation8 [shape = 'u8[512]{0}', space=vmem, size = 0x400, scoped, tag = 'input window, operand 2, single buffered']
    #allocation9 [shape = 'u8[65536]{0}', space=vmem, size = 0x10000, scoped, tag = 'input window, operand 3, single buffered']
    #allocation10 [shape = 's32[1]{0}', space=sflag, size = 0x4, scoped, tag = 'scoped memory for tpu_custom_call.1']
    #allocation11 [shape = 'u8[512]{0}', space=vmem, size = 0x400, scoped, tag = 'input window, operand 4, single buffered']
    #allocation12 [shape = 'u8[65536]{0}', space=vmem, size = 0x10000, scoped, tag = 'output window, operand 0, single buffered']
    %10 = vsyncpa [#allocation4], 0
    %11 = vsyncpa [#allocation7], 0
    %12 = vsyncpa [#allocation10], 0
    %13 = vsyncpa [#allocation5], 0
    // Predicated region
    $region2: #{tpu_custom_call.1} parent=1 // pred_check
      _
    $region3: #{tpu_custom_call.1} parent=1 // pred_check_branch
      %15 = sbr.rel (0) target = $region5
    $region4: #{tpu_custom_call.1} parent=1 // pred_region
      %s17 = ssub.s32 2048, 2048
      %18 = vsyncadd [#allocation4], %s17
      %s19 = sshll.u32 [#allocation3], 4
      %s20 = int_to_ptr.vmem [resolvable:$true] %s19
      %25 = dma.hbm_to_vmem [thread:$0]  %s0, 2048, %s20, [#allocation4], 128, 128, 8
    $region5: #{tpu_custom_call.1} parent=1 // pred_fallthru
      _
    // Predicated region
    $region6: #{tpu_custom_call.1} parent=1 // pred_check
      _
    $region7: #{tpu_custom_call.1} parent=1 // pred_check_branch
      %27 = sbr.rel (0) target = $region9
    $region8: #{tpu_custom_call.1} parent=1 // pred_region
      %s29 = ssub.s32 2048, 2048
      %30 = vsyncadd [#allocation7], %s29
      %s31 = sshll.u32 [#allocation6], 4
      %s32 = int_to_ptr.vmem [resolvable:$true] %s31
      %37 = dma.hbm_to_vmem [thread:$0]  %s1, 2048, %s32, [#allocation7], 128, 128, 8
    $region9: #{tpu_custom_call.1} parent=1 // pred_fallthru
      _
    // Predicated region
    $region10: #{tpu_custom_call.1} parent=1 // pred_check
      _
    $region11: #{tpu_custom_call.1} parent=1 // pred_check_branch
      %39 = sbr.rel (0) target = $region13
    $region12: #{tpu_custom_call.1} parent=1 // pred_region
      %s41 = ssub.s32 16, 16
      %42 = vsyncadd [#allocation7], %s41
      %s44 = sshll.u32 [#allocation8], 4
      %s45 = int_to_ptr.vmem [resolvable:$true] %s44
      %47 = dma.hbm_to_vmem [thread:$0]  %s2, 16, %s45, [#allocation7]
    $region13: #{tpu_custom_call.1} parent=1 // pred_fallthru
      _
    // Predicated region
    $region14: #{tpu_custom_call.1} parent=1 // pred_check
      _
    $region15: #{tpu_custom_call.1} parent=1 // pred_check_branch
      %49 = sbr.rel (0) target = $region17
    $region16: #{tpu_custom_call.1} parent=1 // pred_region
      %s51 = ssub.s32 2048, 2048
      %52 = vsyncadd [#allocation10], %s51
      %s53 = sshll.u32 [#allocation9], 4
      %s54 = int_to_ptr.vmem [resolvable:$true] %s53
      %59 = dma.hbm_to_vmem [thread:$0]  %s3, 2048, %s54, [#allocation10], 128, 128, 8
    $region17: #{tpu_custom_call.1} parent=1 // pred_fallthru
      _
    // Predicated region
    $region18: #{tpu_custom_call.1} parent=1 // pred_check
      _
    $region19: #{tpu_custom_call.1} parent=1 // pred_check_branch
      %61 = sbr.rel (0) target = $region21
    $region20: #{tpu_custom_call.1} parent=1 // pred_region
      %s63 = ssub.s32 16, 16
      %64 = vsyncadd [#allocation10], %s63
      %s66 = sshll.u32 [#allocation11], 4
      %s67 = int_to_ptr.vmem [resolvable:$true] %s66
      %69 = dma.hbm_to_vmem [thread:$0]  %s4, 16, %s67, [#allocation10]
    $region21: #{tpu_custom_call.1} parent=1 // pred_fallthru
      _
    // Predicated region
    $region22: #{tpu_custom_call.1} parent=1 // pred_check
      _
    $region23: #{tpu_custom_call.1} parent=1 // pred_check_branch
      %71 = sbr.rel (0) target = $region25
    $region24: #{tpu_custom_call.1} parent=1 // pred_region
      %72 = dma.done [#allocation4], 2048
    $region25: #{tpu_custom_call.1} parent=1 // pred_fallthru
      _
    // Predicated region
    $region26: #{tpu_custom_call.1} parent=1 // pred_check
      _
    $region27: #{tpu_custom_call.1} parent=1 // pred_check_branch
      %74 = sbr.rel (0) target = $region29
    $region28: #{tpu_custom_call.1} parent=1 // pred_region
      %75 = dma.done [#allocation7], 2048
    $region29: #{tpu_custom_call.1} parent=1 // pred_fallthru
      _
    // Predicated region
    $region30: #{tpu_custom_call.1} parent=1 // pred_check
      _
    $region31: #{tpu_custom_call.1} parent=1 // pred_check_branch
      %77 = sbr.rel (0) target = $region33
    $region32: #{tpu_custom_call.1} parent=1 // pred_region
      %78 = dma.done [#allocation7], 16
    $region33: #{tpu_custom_call.1} parent=1 // pred_fallthru
      _
    // Predicated region
    $region34: #{tpu_custom_call.1} parent=1 // pred_check
      _
    $region35: #{tpu_custom_call.1} parent=1 // pred_check_branch
      %80 = sbr.rel (0) target = $region37
    $region36: #{tpu_custom_call.1} parent=1 // pred_region
      %81 = dma.done [#allocation10], 2048
    $region37: #{tpu_custom_call.1} parent=1 // pred_fallthru
      _
    // Predicated region
    $region38: #{tpu_custom_call.1} parent=1 // pred_check
      _
    $region39: #{tpu_custom_call.1} parent=1 // pred_check_branch
      %83 = sbr.rel (0) target = $region41
    $region40: #{tpu_custom_call.1} parent=1 // pred_region
      %84 = dma.done [#allocation10], 16
    $region41: #{tpu_custom_call.1} parent=1 // pred_fallthru
      _
    %p85 = scmp.eq.s32.totalorder 0, 0
    // Predicated region
    $region42: #{tpu_custom_call.1} parent=1 // pred_check
      %p86 = pneg %p85
    $region43: #{tpu_custom_call.1} parent=1 // pred_check_branch
      %88 = sbr.rel (%p86) target = $region45
    $region44: #{tpu_custom_call.1} parent=1 // pred_region
      %89 = vst [vmem:[#allocation2] sm:$0xff] 0.0
      %90 = vst [vmem:[#allocation2 + $0x8] sm:$0xff] 0.0
      %91 = vst [vmem:[#allocation2 + $0x10] sm:$0xff] 0.0
      %92 = vst [vmem:[#allocation2 + $0x18] sm:$0xff] 0.0
      %93 = vst [vmem:[#allocation2 + $0x20] sm:$0xff] 0.0
      %94 = vst [vmem:[#allocation2 + $0x28] sm:$0xff] 0.0
      %95 = vst [vmem:[#allocation2 + $0x30] sm:$0xff] 0.0
      %96 = vst [vmem:[#allocation2 + $0x38] sm:$0xff] 0.0
      %97 = vst [vmem:[#allocation2 + $0x40] sm:$0xff] 0.0
      %98 = vst [vmem:[#allocation2 + $0x48] sm:$0xff] 0.0
      %99 = vst [vmem:[#allocation2 + $0x50] sm:$0xff] 0.0
      %100 = vst [vmem:[#allocation2 + $0x58] sm:$0xff] 0.0
      %101 = vst [vmem:[#allocation2 + $0x60] sm:$0xff] 0.0
      %102 = vst [vmem:[#allocation2 + $0x68] sm:$0xff] 0.0
      %103 = vst [vmem:[#allocation2 + $0x70] sm:$0xff] 0.0
      %104 = vst [vmem:[#allocation2 + $0x78] sm:$0xff] 0.0
    $region45: #{tpu_custom_call.1} parent=1 // pred_fallthru
      _
    %v105 = vld [vmem:[#allocation3] sm:$0xff]
    %v106 = vld [vmem:[#allocation3 + $0x8] sm:$0xff]
    %v107 = vld [vmem:[#allocation3 + $0x10] sm:$0xff]
    %v108 = vld [vmem:[#allocation3 + $0x18] sm:$0xff]
    %v109 = vld [vmem:[#allocation3 + $0x20] sm:$0xff]
    %v110 = vld [vmem:[#allocation3 + $0x28] sm:$0xff]
    %v111 = vld [vmem:[#allocation3 + $0x30] sm:$0xff]
    %v112 = vld [vmem:[#allocation3 + $0x38] sm:$0xff]
    %v113 = vld [vmem:[#allocation3 + $0x40] sm:$0xff]
    %v114 = vld [vmem:[#allocation3 + $0x48] sm:$0xff]
    %v115 = vld [vmem:[#allocation3 + $0x50] sm:$0xff]
    %v116 = vld [vmem:[#allocation3 + $0x58] sm:$0xff]
    %v117 = vld [vmem:[#allocation3 + $0x60] sm:$0xff]
    %v118 = vld [vmem:[#allocation3 + $0x68] sm:$0xff]
    %v119 = vld [vmem:[#allocation3 + $0x70] sm:$0xff]
    %v120 = vld [vmem:[#allocation3 + $0x78] sm:$0xff]
    %v121 = vld [vmem:[#allocation6] sm:$0xff]
    %v122 = vld [vmem:[#allocation6 + $0x8] sm:$0xff]
    %v123 = vld [vmem:[#allocation6 + $0x10] sm:$0xff]
    %v124 = vld [vmem:[#allocation6 + $0x18] sm:$0xff]
    %v125 = vld [vmem:[#allocation6 + $0x20] sm:$0xff]
    %v126 = vld [vmem:[#allocation6 + $0x28] sm:$0xff]
    %v127 = vld [vmem:[#allocation6 + $0x30] sm:$0xff]
    %v128 = vld [vmem:[#allocation6 + $0x38] sm:$0xff]
    %v129 = vld [vmem:[#allocation6 + $0x40] sm:$0xff]
    %v130 = vld [vmem:[#allocation6 + $0x48] sm:$0xff]
    %v131 = vld [vmem:[#allocation6 + $0x50] sm:$0xff]
    %v132 = vld [vmem:[#allocation6 + $0x58] sm:$0xff]
    %v133 = vld [vmem:[#allocation6 + $0x60] sm:$0xff]
    %v134 = vld [vmem:[#allocation6 + $0x68] sm:$0xff]
    %v135 = vld [vmem:[#allocation6 + $0x70] sm:$0xff]
    %v136 = vld [vmem:[#allocation6 + $0x78] sm:$0xff]
    %v137 = vld [vmem:[#allocation8] sm:$0x1]
    %v139 = vlaneseq
    %v140 = vshrl.u32 %v139, 7
    %v141 = vsub.s32 0, %v140
    %v142 = vrot.slane %v137, %v141
    %144 = vmatprep.subr.mxu0 0.0
    %145 = vmatpush1.msra.mxu0 %v121
    %146 = vmatprep.subr.mxu0 0.0
    %147 = vmatpush1.msra.mxu0 %v122
    %148 = vmatprep.subr.mxu0 0.0
    %149 = vmatpush1.msra.mxu0 %v123
    %150 = vmatprep.subr.mxu0 0.0
    %151 = vmatpush1.msra.mxu0 %v124
    %152 = vmatprep.subr.mxu0 0.0
    %153 = vmatpush1.msra.mxu0 %v125
    %154 = vmatprep.subr.mxu0 0.0
    %155 = vmatpush1.msra.mxu0 %v126
    %156 = vmatprep.subr.mxu0 0.0
    %157 = vmatpush1.msra.mxu0 %v127
    %158 = vmatprep.subr.mxu0 0.0
    %159 = vmatpush1.msra.mxu0 %v128
    %160 = vmatprep.subr.mxu0 0.0
    %161 = vmatpush1.msra.mxu0 %v129
    %162 = vmatprep.subr.mxu0 0.0
    %163 = vmatpush1.msra.mxu0 %v130
    %164 = vmatprep.subr.mxu0 0.0
    %165 = vmatpush1.msra.mxu0 %v131
    %166 = vmatprep.subr.mxu0 0.0
    %167 = vmatpush1.msra.mxu0 %v132
    %168 = vmatprep.subr.mxu0 0.0
    %169 = vmatpush1.msra.mxu0 %v133
    %170 = vmatprep.subr.mxu0 0.0
    %171 = vmatpush1.msra.mxu0 %v134
    %172 = vmatprep.subr.mxu0 0.0
    %173 = vmatpush1.msra.mxu0 %v135
    %174 = vmatprep.subr.mxu0 0.0
    %175 = vmatpush1.msra.mxu0 %v136
    %176 = vmatprep.subr.mxu0 0.0
    %177 = vmatpush1.msra.mxu0 0.0
    %178 = vmatprep.subr.mxu0 0.0
    %179 = vmatpush1.msra.mxu0 0.0
    %180 = vmatprep.subr.mxu0 0.0
    %181 = vmatpush1.msra.mxu0 0.0
    %182 = vmatprep.subr.mxu0 0.0
    %183 = vmatpush1.msra.mxu0 0.0
    %184 = vmatprep.subr.mxu0 0.0
    %185 = vmatpush1.msra.mxu0 0.0
    %186 = vmatprep.subr.mxu0 0.0
    %187 = vmatpush1.msra.mxu0 0.0
    %188 = vmatprep.subr.mxu0 0.0
    %189 = vmatpush1.msra.mxu0 0.0
    %190 = vmatprep.subr.mxu0 0.0
    %191 = vmatpush1.msra.mxu0 0.0
    %192 = vmatprep.subr.mxu0 0.0
    %193 = vmatpush1.msra.mxu0 0.0
    %194 = vmatprep.subr.mxu0 0.0
    %195 = vmatpush1.msra.mxu0 0.0
    %196 = vmatprep.subr.mxu0 0.0
    %197 = vmatpush1.msra.mxu0 0.0
    %198 = vmatprep.subr.mxu0 0.0
    %199 = vmatpush1.msra.mxu0 0.0
    %200 = vmatprep.subr.mxu0 0.0
    %201 = vmatpush1.msra.mxu0 0.0
    %202 = vmatprep.subr.mxu0 0.0
    %203 = vmatpush1.msra.mxu0 0.0
    %204 = vmatprep.subr.mxu0 0.0
    %205 = vmatpush1.msra.mxu0 0.0
    %206 = vmatprep.subr.mxu0 0.0
    %207 = vmatpush1.msra.mxu0 0.0
    %208 = vmatprep.mubr.f32.mxu0 0.0
    %209 = vmatmul.mubr.f32.gmra.mrb[0].mxu0 %v105
    %v210 = vpop.f32.mrb[0].mxu0
    %v211 = vadd.f32 %v142, %v210
    %v212 = vpop.f32.mrb[0].mxu0
    %213 = vmatprep.mubr.f32.mxu0 0.0
    %214 = vmatmul.mubr.f32.gmra.mrb[0].mxu0 %v106
    %v215 = vpop.f32.mrb[0].mxu0
    %v216 = vadd.f32 %v142, %v215
    %v217 = vpop.f32.mrb[0].mxu0
    %218 = vmatprep.mubr.f32.mxu0 0.0
    %219 = vmatmul.mubr.f32.gmra.mrb[0].mxu0 %v107
    %v220 = vpop.f32.mrb[0].mxu0
    %v221 = vadd.f32 %v142, %v220
    %v222 = vpop.f32.mrb[0].mxu0
    %223 = vmatprep.mubr.f32.mxu0 0.0
    %224 = vmatmul.mubr.f32.gmra.mrb[0].mxu0 %v108
    %v225 = vpop.f32.mrb[0].mxu0
    %v226 = vadd.f32 %v142, %v225
    %v227 = vpop.f32.mrb[0].mxu0
    %228 = vmatprep.mubr.f32.mxu0 0.0
    %229 = vmatmul.mubr.f32.gmra.mrb[0].mxu0 %v109
    %v230 = vpop.f32.mrb[0].mxu0
    %v231 = vadd.f32 %v142, %v230
    %v232 = vpop.f32.mrb[0].mxu0
    %233 = vmatprep.mubr.f32.mxu0 0.0
    %234 = vmatmul.mubr.f32.gmra.mrb[0].mxu0 %v110
    %v235 = vpop.f32.mrb[0].mxu0
    %v236 = vadd.f32 %v142, %v235
    %v237 = vpop.f32.mrb[0].mxu0
    %238 = vmatprep.mubr.f32.mxu0 0.0
    %239 = vmatmul.mubr.f32.gmra.mrb[0].mxu0 %v111
    %v240 = vpop.f32.mrb[0].mxu0
    %v241 = vadd.f32 %v142, %v240
    %v242 = vpop.f32.mrb[0].mxu0
    %243 = vmatprep.mubr.f32.mxu0 0.0
    %244 = vmatmul.mubr.f32.gmra.mrb[0].mxu0 %v112
    %v245 = vpop.f32.mrb[0].mxu0
    %v246 = vadd.f32 %v142, %v245
    %v247 = vpop.f32.mrb[0].mxu0
    %248 = vmatprep.mubr.f32.mxu0 0.0
    %249 = vmatmul.mubr.f32.gmra.mrb[0].mxu0 %v113
    %v250 = vpop.f32.mrb[0].mxu0
    %v251 = vadd.f32 %v142, %v250
    %v252 = vpop.f32.mrb[0].mxu0
    %253 = vmatprep.mubr.f32.mxu0 0.0
    %254 = vmatmul.mubr.f32.gmra.mrb[0].mxu0 %v114
    %v255 = vpop.f32.mrb[0].mxu0
    %v256 = vadd.f32 %v142, %v255
    %v257 = vpop.f32.mrb[0].mxu0
    %258 = vmatprep.mubr.f32.mxu0 0.0
    %259 = vmatmul.mubr.f32.gmra.mrb[0].mxu0 %v115
    %v260 = vpop.f32.mrb[0].mxu0
    %v261 = vadd.f32 %v142, %v260
    %v262 = vpop.f32.mrb[0].mxu0
    %263 = vmatprep.mubr.f32.mxu0 0.0
    %264 = vmatmul.mubr.f32.gmra.mrb[0].mxu0 %v116
    %v265 = vpop.f32.mrb[0].mxu0
    %v266 = vadd.f32 %v142, %v265
    %v267 = vpop.f32.mrb[0].mxu0
    %268 = vmatprep.mubr.f32.mxu0 0.0
    %269 = vmatmul.mubr.f32.gmra.mrb[0].mxu0 %v117
    %v270 = vpop.f32.mrb[0].mxu0
    %v271 = vadd.f32 %v142, %v270
    %v272 = vpop.f32.mrb[0].mxu0
    %273 = vmatprep.mubr.f32.mxu0 0.0
    %274 = vmatmul.mubr.f32.gmra.mrb[0].mxu0 %v118
    %v275 = vpop.f32.mrb[0].mxu0
    %v276 = vadd.f32 %v142, %v275
    %v277 = vpop.f32.mrb[0].mxu0
    %278 = vmatprep.mubr.f32.mxu0 0.0
    %279 = vmatmul.mubr.f32.gmra.mrb[0].mxu0 %v119
    %v280 = vpop.f32.mrb[0].mxu0
    %v281 = vadd.f32 %v142, %v280
    %v282 = vpop.f32.mrb[0].mxu0
    %283 = vmatprep.mubr.f32.mxu0 0.0
    %284 = vmatmul.mubr.f32.gmra.mrb[0].mxu0 %v120
    %v285 = vpop.f32.mrb[0].mxu0
    %v286 = vadd.f32 %v142, %v285
    %v287 = vpop.f32.mrb[0].mxu0
    %288 = vdwg.mxu0
    %v289 = vmax.f32 %v211, 0.0
    %v290 = vmax.f32 %v216, 0.0
    %v291 = vmax.f32 %v221, 0.0
    %v292 = vmax.f32 %v226, 0.0
    %v293 = vmax.f32 %v231, 0.0
    %v294 = vmax.f32 %v236, 0.0
    %v295 = vmax.f32 %v241, 0.0
    %v296 = vmax.f32 %v246, 0.0
    %v297 = vmax.f32 %v251, 0.0
    %v298 = vmax.f32 %v256, 0.0
    %v299 = vmax.f32 %v261, 0.0
    %v300 = vmax.f32 %v266, 0.0
    %v301 = vmax.f32 %v271, 0.0
    %v302 = vmax.f32 %v276, 0.0
    %v303 = vmax.f32 %v281, 0.0
    %v304 = vmax.f32 %v286, 0.0
    %v305 = vld [vmem:[#allocation2] sm:$0xff]
    %v306 = vld [vmem:[#allocation2 + $0x8] sm:$0xff]
    %v307 = vld [vmem:[#allocation2 + $0x10] sm:$0xff]
    %v308 = vld [vmem:[#allocation2 + $0x18] sm:$0xff]
    %v309 = vld [vmem:[#allocation2 + $0x20] sm:$0xff]
    %v310 = vld [vmem:[#allocation2 + $0x28] sm:$0xff]
    %v311 = vld [vmem:[#allocation2 + $0x30] sm:$0xff]
    %v312 = vld [vmem:[#allocation2 + $0x38] sm:$0xff]
    %v313 = vld [vmem:[#allocation2 + $0x40] sm:$0xff]
    %v314 = vld [vmem:[#allocation2 + $0x48] sm:$0xff]
    %v315 = vld [vmem:[#allocation2 + $0x50] sm:$0xff]
    %v316 = vld [vmem:[#allocation2 + $0x58] sm:$0xff]
    %v317 = vld [vmem:[#allocation2 + $0x60] sm:$0xff]
    %v318 = vld [vmem:[#allocation2 + $0x68] sm:$0xff]
    %v319 = vld [vmem:[#allocation2 + $0x70] sm:$0xff]
    %v320 = vld [vmem:[#allocation2 + $0x78] sm:$0xff]
    %v321 = vld [vmem:[#allocation9] sm:$0xff]
    %v322 = vld [vmem:[#allocation9 + $0x8] sm:$0xff]
    %v323 = vld [vmem:[#allocation9 + $0x10] sm:$0xff]
    %v324 = vld [vmem:[#allocation9 + $0x18] sm:$0xff]
    %v325 = vld [vmem:[#allocation9 + $0x20] sm:$0xff]
    %v326 = vld [vmem:[#allocation9 + $0x28] sm:$0xff]
    %v327 = vld [vmem:[#allocation9 + $0x30] sm:$0xff]
    %v328 = vld [vmem:[#allocation9 + $0x38] sm:$0xff]
    %v329 = vld [vmem:[#allocation9 + $0x40] sm:$0xff]
    %v330 = vld [vmem:[#allocation9 + $0x48] sm:$0xff]
    %v331 = vld [vmem:[#allocation9 + $0x50] sm:$0xff]
    %v332 = vld [vmem:[#allocation9 + $0x58] sm:$0xff]
    %v333 = vld [vmem:[#allocation9 + $0x60] sm:$0xff]
    %v334 = vld [vmem:[#allocation9 + $0x68] sm:$0xff]
    %v335 = vld [vmem:[#allocation9 + $0x70] sm:$0xff]
    %v336 = vld [vmem:[#allocation9 + $0x78] sm:$0xff]
    %337 = vmatprep.subr.mxu0 0.0
    %338 = vmatpush1.msra.mxu0 %v321
    %339 = vmatprep.subr.mxu0 0.0
    %340 = vmatpush1.msra.mxu0 %v322
    %341 = vmatprep.subr.mxu0 0.0
    %342 = vmatpush1.msra.mxu0 %v323
    %343 = vmatprep.subr.mxu0 0.0
    %344 = vmatpush1.msra.mxu0 %v324
    %345 = vmatprep.subr.mxu0 0.0
    %346 = vmatpush1.msra.mxu0 %v325
    %347 = vmatprep.subr.mxu0 0.0
    %348 = vmatpush1.msra.mxu0 %v326
    %349 = vmatprep.subr.mxu0 0.0
    %350 = vmatpush1.msra.mxu0 %v327
    %351 = vmatprep.subr.mxu0 0.0
    %352 = vmatpush1.msra.mxu0 %v328
    %353 = vmatprep.subr.mxu0 0.0
    %354 = vmatpush1.msra.mxu0 %v329
    %355 = vmatprep.subr.mxu0 0.0
    %356 = vmatpush1.msra.mxu0 %v330
    %357 = vmatprep.subr.mxu0 0.0
    %358 = vmatpush1.msra.mxu0 %v331
    %359 = vmatprep.subr.mxu0 0.0
    %360 = vmatpush1.msra.mxu0 %v332
    %361 = vmatprep.subr.mxu0 0.0
    %362 = vmatpush1.msra.mxu0 %v333
    %363 = vmatprep.subr.mxu0 0.0
    %364 = vmatpush1.msra.mxu0 %v334
    %365 = vmatprep.subr.mxu0 0.0
    %366 = vmatpush1.msra.mxu0 %v335
    %367 = vmatprep.subr.mxu0 0.0
    %368 = vmatpush1.msra.mxu0 %v336
    %369 = vmatprep.subr.mxu0 0.0
    %370 = vmatpush1.msra.mxu0 0.0
    %371 = vmatprep.subr.mxu0 0.0
    %372 = vmatpush1.msra.mxu0 0.0
    %373 = vmatprep.subr.mxu0 0.0
    %374 = vmatpush1.msra.mxu0 0.0
    %375 = vmatprep.subr.mxu0 0.0
    %376 = vmatpush1.msra.mxu0 0.0
    %377 = vmatprep.subr.mxu0 0.0
    %378 = vmatpush1.msra.mxu0 0.0
    %379 = vmatprep.subr.mxu0 0.0
    %380 = vmatpush1.msra.mxu0 0.0
    %381 = vmatprep.subr.mxu0 0.0
    %382 = vmatpush1.msra.mxu0 0.0
    %383 = vmatprep.subr.mxu0 0.0
    %384 = vmatpush1.msra.mxu0 0.0
    %385 = vmatprep.subr.mxu0 0.0
    %386 = vmatpush1.msra.mxu0 0.0
    %387 = vmatprep.subr.mxu0 0.0
    %388 = vmatpush1.msra.mxu0 0.0
    %389 = vmatprep.subr.mxu0 0.0
    %390 = vmatpush1.msra.mxu0 0.0
    %391 = vmatprep.subr.mxu0 0.0
    %392 = vmatpush1.msra.mxu0 0.0
    %393 = vmatprep.subr.mxu0 0.0
    %394 = vmatpush1.msra.mxu0 0.0
    %395 = vmatprep.subr.mxu0 0.0
    %396 = vmatpush1.msra.mxu0 0.0
    %397 = vmatprep.subr.mxu0 0.0
    %398 = vmatpush1.msra.mxu0 0.0
    %399 = vmatprep.subr.mxu0 0.0
    %400 = vmatpush1.msra.mxu0 0.0
    %401 = vmatprep.mubr.f32.mxu0 0.0
    %402 = vmatmul.mubr.f32.gmra.mrb[0].mxu0 %v289
    %v403 = vpop.f32.mrb[0].mxu0
    %v404 = vadd.f32 0.0, %v403
    %v405 = vpop.f32.mrb[0].mxu0
    %406 = vmatprep.mubr.f32.mxu0 0.0
    %407 = vmatmul.mubr.f32.gmra.mrb[0].mxu0 %v290
    %v408 = vpop.f32.mrb[0].mxu0
    %v409 = vadd.f32 0.0, %v408
    %v410 = vpop.f32.mrb[0].mxu0
    %411 = vmatprep.mubr.f32.mxu0 0.0
    %412 = vmatmul.mubr.f32.gmra.mrb[0].mxu0 %v291
    %v413 = vpop.f32.mrb[0].mxu0
    %v414 = vadd.f32 0.0, %v413
    %v415 = vpop.f32.mrb[0].mxu0
    %416 = vmatprep.mubr.f32.mxu0 0.0
    %417 = vmatmul.mubr.f32.gmra.mrb[0].mxu0 %v292
    %v418 = vpop.f32.mrb[0].mxu0
    %v419 = vadd.f32 0.0, %v418
    %v420 = vpop.f32.mrb[0].mxu0
    %421 = vmatprep.mubr.f32.mxu0 0.0
    %422 = vmatmul.mubr.f32.gmra.mrb[0].mxu0 %v293
    %v423 = vpop.f32.mrb[0].mxu0
    %v424 = vadd.f32 0.0, %v423
    %v425 = vpop.f32.mrb[0].mxu0
    %426 = vmatprep.mubr.f32.mxu0 0.0
    %427 = vmatmul.mubr.f32.gmra.mrb[0].mxu0 %v294
    %v428 = vpop.f32.mrb[0].mxu0
    %v429 = vadd.f32 0.0, %v428
    %v430 = vpop.f32.mrb[0].mxu0
    %431 = vmatprep.mubr.f32.mxu0 0.0
    %432 = vmatmul.mubr.f32.gmra.mrb[0].mxu0 %v295
    %v433 = vpop.f32.mrb[0].mxu0
    %v434 = vadd.f32 0.0, %v433
    %v435 = vpop.f32.mrb[0].mxu0
    %436 = vmatprep.mubr.f32.mxu0 0.0
    %437 = vmatmul.mubr.f32.gmra.mrb[0].mxu0 %v296
    %v438 = vpop.f32.mrb[0].mxu0
    %v439 = vadd.f32 0.0, %v438
    %v440 = vpop.f32.mrb[0].mxu0
    %441 = vmatprep.mubr.f32.mxu0 0.0
    %442 = vmatmul.mubr.f32.gmra.mrb[0].mxu0 %v297
    %v443 = vpop.f32.mrb[0].mxu0
    %v444 = vadd.f32 0.0, %v443
    %v445 = vpop.f32.mrb[0].mxu0
    %446 = vmatprep.mubr.f32.mxu0 0.0
    %447 = vmatmul.mubr.f32.gmra.mrb[0].mxu0 %v298
    %v448 = vpop.f32.mrb[0].mxu0
    %v449 = vadd.f32 0.0, %v448
    %v450 = vpop.f32.mrb[0].mxu0
    %451 = vmatprep.mubr.f32.mxu0 0.0
    %452 = vmatmul.mubr.f32.gmra.mrb[0].mxu0 %v299
    %v453 = vpop.f32.mrb[0].mxu0
    %v454 = vadd.f32 0.0, %v453
    %v455 = vpop.f32.mrb[0].mxu0
    %456 = vmatprep.mubr.f32.mxu0 0.0
    %457 = vmatmul.mubr.f32.gmra.mrb[0].mxu0 %v300
    %v458 = vpop.f32.mrb[0].mxu0
    %v459 = vadd.f32 0.0, %v458
    %v460 = vpop.f32.mrb[0].mxu0
    %461 = vmatprep.mubr.f32.mxu0 0.0
    %462 = vmatmul.mubr.f32.gmra.mrb[0].mxu0 %v301
    %v463 = vpop.f32.mrb[0].mxu0
    %v464 = vadd.f32 0.0, %v463
    %v465 = vpop.f32.mrb[0].mxu0
    %466 = vmatprep.mubr.f32.mxu0 0.0
    %467 = vmatmul.mubr.f32.gmra.mrb[0].mxu0 %v302
    %v468 = vpop.f32.mrb[0].mxu0
    %v469 = vadd.f32 0.0, %v468
    %v470 = vpop.f32.mrb[0].mxu0
    %471 = vmatprep.mubr.f32.mxu0 0.0
    %472 = vmatmul.mubr.f32.gmra.mrb[0].mxu0 %v303
    %v473 = vpop.f32.mrb[0].mxu0
    %v474 = vadd.f32 0.0, %v473
    %v475 = vpop.f32.mrb[0].mxu0
    %476 = vmatprep.mubr.f32.mxu0 0.0
    %477 = vmatmul.mubr.f32.gmra.mrb[0].mxu0 %v304
    %v478 = vpop.f32.mrb[0].mxu0
    %v479 = vadd.f32 0.0, %v478
    %v480 = vpop.f32.mrb[0].mxu0
    %481 = vdwg.mxu0
    %v482 = vadd.f32 %v305, %v404
    %v483 = vadd.f32 %v306, %v409
    %v484 = vadd.f32 %v307, %v414
    %v485 = vadd.f32 %v308, %v419
    %v486 = vadd.f32 %v309, %v424
    %v487 = vadd.f32 %v310, %v429
    %v488 = vadd.f32 %v311, %v434
    %v489 = vadd.f32 %v312, %v439
    %v490 = vadd.f32 %v313, %v444
    %v491 = vadd.f32 %v314, %v449
    %v492 = vadd.f32 %v315, %v454
    %v493 = vadd.f32 %v316, %v459
    %v494 = vadd.f32 %v317, %v464
    %v495 = vadd.f32 %v318, %v469
    %v496 = vadd.f32 %v319, %v474
    %v497 = vadd.f32 %v320, %v479
    %498 = vst [vmem:[#allocation2] sm:$0xff] %v482
    %499 = vst [vmem:[#allocation2 + $0x8] sm:$0xff] %v483
    %500 = vst [vmem:[#allocation2 + $0x10] sm:$0xff] %v484
    %501 = vst [vmem:[#allocation2 + $0x18] sm:$0xff] %v485
    %502 = vst [vmem:[#allocation2 + $0x20] sm:$0xff] %v486
    %503 = vst [vmem:[#allocation2 + $0x28] sm:$0xff] %v487
    %504 = vst [vmem:[#allocation2 + $0x30] sm:$0xff] %v488
    %505 = vst [vmem:[#allocation2 + $0x38] sm:$0xff] %v489
    %506 = vst [vmem:[#allocation2 + $0x40] sm:$0xff] %v490
    %507 = vst [vmem:[#allocation2 + $0x48] sm:$0xff] %v491
    %508 = vst [vmem:[#allocation2 + $0x50] sm:$0xff] %v492
    %509 = vst [vmem:[#allocation2 + $0x58] sm:$0xff] %v493
    %510 = vst [vmem:[#allocation2 + $0x60] sm:$0xff] %v494
    %511 = vst [vmem:[#allocation2 + $0x68] sm:$0xff] %v495
    %512 = vst [vmem:[#allocation2 + $0x70] sm:$0xff] %v496
    %513 = vst [vmem:[#allocation2 + $0x78] sm:$0xff] %v497
    // Predicated region
    $region46: #{tpu_custom_call.1} parent=1 // pred_check
      %p514 = pneg %p85
    $region47: #{tpu_custom_call.1} parent=1 // pred_check_branch
      %516 = sbr.rel (%p514) target = $region49
    $region48: #{tpu_custom_call.1} parent=1 // pred_region
      %v517 = vld [vmem:[#allocation2] sm:$0xff]
      %v518 = vld [vmem:[#allocation2 + $0x8] sm:$0xff]
      %v519 = vld [vmem:[#allocation2 + $0x10] sm:$0xff]
      %v520 = vld [vmem:[#allocation2 + $0x18] sm:$0xff]
      %v521 = vld [vmem:[#allocation2 + $0x20] sm:$0xff]
      %v522 = vld [vmem:[#allocation2 + $0x28] sm:$0xff]
      %v523 = vld [vmem:[#allocation2 + $0x30] sm:$0xff]
      %v524 = vld [vmem:[#allocation2 + $0x38] sm:$0xff]
      %v525 = vld [vmem:[#allocation2 + $0x40] sm:$0xff]
      %v526 = vld [vmem:[#allocation2 + $0x48] sm:$0xff]
      %v527 = vld [vmem:[#allocation2 + $0x50] sm:$0xff]
      %v528 = vld [vmem:[#allocation2 + $0x58] sm:$0xff]
      %v529 = vld [vmem:[#allocation2 + $0x60] sm:$0xff]
      %v530 = vld [vmem:[#allocation2 + $0x68] sm:$0xff]
      %v531 = vld [vmem:[#allocation2 + $0x70] sm:$0xff]
      %v532 = vld [vmem:[#allocation2 + $0x78] sm:$0xff]
      %v533 = vld [vmem:[#allocation11] sm:$0x1]
      %v535 = vlaneseq
      %v536 = vshrl.u32 %v535, 7
      %v537 = vsub.s32 0, %v536
      %v538 = vrot.slane %v533, %v537
      %v540 = vadd.f32 %v517, %v538
      %v541 = vadd.f32 %v518, %v538
      %v542 = vadd.f32 %v519, %v538
      %v543 = vadd.f32 %v520, %v538
      %v544 = vadd.f32 %v521, %v538
      %v545 = vadd.f32 %v522, %v538
      %v546 = vadd.f32 %v523, %v538
      %v547 = vadd.f32 %v524, %v538
      %v548 = vadd.f32 %v525, %v538
      %v549 = vadd.f32 %v526, %v538
      %v550 = vadd.f32 %v527, %v538
      %v551 = vadd.f32 %v528, %v538
      %v552 = vadd.f32 %v529, %v538
      %v553 = vadd.f32 %v530, %v538
      %v554 = vadd.f32 %v531, %v538
      %v555 = vadd.f32 %v532, %v538
      %556 = vst [vmem:[#allocation12] sm:$0xff] %v540
      %557 = vst [vmem:[#allocation12 + $0x8] sm:$0xff] %v541
      %558 = vst [vmem:[#allocation12 + $0x10] sm:$0xff] %v542
      %559 = vst [vmem:[#allocation12 + $0x18] sm:$0xff] %v543
      %560 = vst [vmem:[#allocation12 + $0x20] sm:$0xff] %v544
      %561 = vst [vmem:[#allocation12 + $0x28] sm:$0xff] %v545
      %562 = vst [vmem:[#allocation12 + $0x30] sm:$0xff] %v546
      %563 = vst [vmem:[#allocation12 + $0x38] sm:$0xff] %v547
      %564 = vst [vmem:[#allocation12 + $0x40] sm:$0xff] %v548
      %565 = vst [vmem:[#allocation12 + $0x48] sm:$0xff] %v549
      %566 = vst [vmem:[#allocation12 + $0x50] sm:$0xff] %v550
      %567 = vst [vmem:[#allocation12 + $0x58] sm:$0xff] %v551
      %568 = vst [vmem:[#allocation12 + $0x60] sm:$0xff] %v552
      %569 = vst [vmem:[#allocation12 + $0x68] sm:$0xff] %v553
      %570 = vst [vmem:[#allocation12 + $0x70] sm:$0xff] %v554
      %571 = vst [vmem:[#allocation12 + $0x78] sm:$0xff] %v555
    $region49: #{tpu_custom_call.1} parent=1 // pred_fallthru
      _
    // Predicated region
    $region50: #{tpu_custom_call.1} parent=1 // pred_check
      _
    $region51: #{tpu_custom_call.1} parent=1 // pred_check_branch
      %573 = sbr.rel (0) target = $region53
    $region52: #{tpu_custom_call.1} parent=1 // pred_region
      %s575 = ssub.s32 2048, 2048
      %576 = vsyncadd [#allocation5], %s575
      %s577 = sshll.u32 [#allocation12], 4
      %s578 = int_to_ptr.vmem [resolvable:$true] %s577
      %583 = dma.vmem_to_hbm [thread:$0]  %s578, 2048, %s5, [#allocation5], 128, 128, 8
    $region53: #{tpu_custom_call.1} parent=1 // pred_fallthru
      _
    // Predicated region
    $region54: #{tpu_custom_call.1} parent=1 // pred_check
      _
    $region55: #{tpu_custom_call.1} parent=1 // pred_check_branch
      %585 = sbr.rel (0) target = $region57
    $region56: #{tpu_custom_call.1} parent=1 // pred_region
      %586 = dma.done [#allocation5], 2048
    $region57: #{tpu_custom_call.1} parent=1 // pred_fallthru
      _
    %587 = vsyncpa [#allocation4], 1
    %588 = vsyncpa [#allocation7], 1
    %589 = vsyncpa [#allocation10], 1
    %590 = vsyncpa [#allocation5], 1

</llo_original>
